<compile_context>
chip_gen: v7x
topology: tpu7x:2x2x1
jax: 0.10.0
libtpu: 0.0.40
codegen_flags: <defaults>
</compile_context>

<pallas_src>
import jax
import jax.numpy as jnp
from jax.experimental import pallas as pl
from jax.experimental.pallas import tpu as pltpu


def _round_up(v, m):
    return ((v + m - 1) // m) * m


def _mlp_kernel(x_ref, w1_ref, b1_ref, w2_ref, b2_ref, o_ref):
    """fc1 -> ReLU -> fc2 on one [tm, input_size] activation tile.

    The activation tile is cast to the weight (MXU compute) dtype *inside*
    the kernel, so no wrapper-side XLA cast round-trips the activations
    through HBM.  Both matmuls accumulate in f32; bias add + ReLU stay in
    f32 (v5e has no bf16 VALU).  The output store is lane-dense
    (class dim pre-padded to a multiple of 128) -> unmasked vst.
    """
    x = x_ref[...].astype(w1_ref.dtype)
    h = jnp.dot(x, w1_ref[...], preferred_element_type=jnp.float32)
    h = jnp.maximum(h + b1_ref[...], 0.0)            # [tm, H] + [1, H], f32 VPU

    # Explicit inter-layer MXU-input cast: compute-dtype choice, not coupled
    # to activation storage dtype.
    y = jnp.dot(h.astype(w2_ref.dtype), w2_ref[...],
                preferred_element_type=jnp.float32)
    y = y + b2_ref[...]                               # [tm, Npad] + [1, Npad], f32
    o_ref[...] = y.astype(o_ref.dtype)


def prepack_params(w1, b1, w2, b2, *, compute_dtype=jnp.bfloat16):
    """One-time packing of FullyConnectedNet parameters for the Pallas kernel.

    Call this once outside the hot path: re-casting / re-padding ~200 KB of
    weights on every forward call dominates wall time for small batches.

    w1: [input_size, hidden]   b1: [hidden]
    w2: [hidden, num_classes]  b2: [num_classes]
    (PyTorch nn.Linear stores weight as [out, in]; pass weight.T here.)
    """
    input_size, hidden = w1.shape
    hidden2, num_classes = w2.shape
    assert hidden == hidden2, "w1/w2 hidden dims must match"

    # Lane-dense output: pad the class dim to a multiple of 128 so the
    # kernel's output store is a full-lane, unmasked vst.
    n_pad = max(128, _round_up(num_classes, 128))

    return {
        "w1": jnp.asarray(w1, compute_dtype),                          # [in, H]
        "b1": jnp.asarray(b1, jnp.float32).reshape(1, hidden),         # [1, H]
        "w2": jnp.pad(jnp.asarray(w2, compute_dtype),
                      ((0, 0), (0, n_pad - num_classes))),             # [H, Npad]
        "b2": jnp.pad(jnp.asarray(b2, jnp.float32),
                      (0, n_pad - num_classes)).reshape(1, n_pad),     # [1, Npad]
        "num_classes": num_classes,
    }


def fully_connected_net_packed(x, packed, *, tm=None, out_dtype=jnp.float32,
                               core_parallel_batch=False):
    """Forward pass on pre-packed params.

    x: [B, input_size] (any float dtype; pass bf16 from upstream to halve the
       dominant activation DMA bytes -- the cast to the MXU compute dtype
       happens inside the kernel either way).
    Returns logits [B, num_classes] in out_dtype (default f32; bf16 halves the
    padded output writeback if downstream tolerates it).
    """
    B, input_size = x.shape
    w1, b1, w2, b2 = packed["w1"], packed["b1"], packed["w2"], packed["b2"]
    num_classes = packed["num_classes"]
    hidden = w1.shape[1]
    n_pad = w2.shape[1]
    assert w1.shape[0] == input_size, "x feature dim must match w1"

    # Batch tile.  The kernel is HBM-bound (~65 FLOP/byte, far below the MXU
    # crossover), so the knobs that matter are lane-dense output (done via
    # n_pad) and row tiles big enough to amortize the ~0.35 us per-grid-step
    # cost against the HBM roofline (measured on v6e: ~63% at 256 rows vs
    # ~85% at 512/1024).  512 keeps the double-buffered working set ~2 MB.
    if tm is None:
        tm = min(512, _round_up(B, 8))
    grid_b = pl.cdiv(B, tm)
    # No batch padding of x: pl.cdiv grid + clipped edge blocks handle a
    # ragged final tile.  Rows are independent in the matmul, and rows beyond
    # B are never written back, so tail garbage cannot contaminate outputs.

    out_itemsize = jnp.dtype(out_dtype).itemsize
    flops = 2 * B * (input_size * hidden + hidden * n_pad)
    bytes_accessed = (x.size * x.dtype.itemsize
                      + w1.size * w1.dtype.itemsize
                      + w2.size * w2.dtype.itemsize
                      + b1.size * b1.dtype.itemsize
                      + b2.size * b2.dtype.itemsize
                      + B * n_pad * out_itemsize)

    # VMEM request: double-buffered x/out tiles + resident weights, with slack,
    # capped well below v7x's 64 MiB physical per-TC VMEM.
    working_set = (2 * tm * input_size * x.dtype.itemsize
                   + 2 * tm * n_pad * out_itemsize
                   + w1.size * w1.dtype.itemsize
                   + w2.size * w2.dtype.itemsize
                   + (b1.size + b2.size) * 4)
    vmem_limit = int(min(32 * 1024 * 1024, max(16 * 1024 * 1024, 4 * working_set)))

    # Batch grid steps are independent.  PARALLEL is safe everywhere;
    # CORE_PARALLEL explicitly splits the batch loop across v7x's 2
    # TensorCores (the <256 KB of weights duplicated per TC is harmless).
    if core_parallel_batch and grid_b > 1:
        batch_sem = pltpu.CORE_PARALLEL
    else:
        batch_sem = pltpu.PARALLEL

    out = pl.pallas_call(
        _mlp_kernel,
        out_shape=jax.ShapeDtypeStruct((B, n_pad), out_dtype),
        grid_spec=pltpu.PrefetchScalarGridSpec(
            num_scalar_prefetch=0,
            grid=(grid_b,),
            in_specs=[
                # Activations: tiled over the batch axis, cast in-kernel.
                pl.BlockSpec((tm, input_size), lambda i: (i, 0)),
                # Weights / biases: same block every step -> VMEM-resident.
                pl.BlockSpec((input_size, hidden), lambda i: (0, 0)),
                pl.BlockSpec((1, hidden), lambda i: (0, 0)),
                pl.BlockSpec((hidden, n_pad), lambda i: (0, 0)),
                pl.BlockSpec((1, n_pad), lambda i: (0, 0)),
            ],
            out_specs=pl.BlockSpec((tm, n_pad), lambda i: (i, 0)),
        ),
        compiler_params=pltpu.CompilerParams(
            dimension_semantics=(batch_sem,),
            vmem_limit_bytes=vmem_limit,
        ),
        cost_estimate=pl.CostEstimate(
            flops=flops, transcendentals=0, bytes_accessed=bytes_accessed),
    )(x, w1, b1, w2, b2)

    # Only the class-lane padding is sliced away (no batch padding was added).
    return out[:, :num_classes]


def fully_connected_net(x, w1, b1, w2, b2, *, compute_dtype=jnp.bfloat16, **kw):
    """One-shot convenience wrapper (packs params on every call).

    Prefer prepack_params() + fully_connected_net_packed() in a hot loop.
    """
    packed = prepack_params(w1, b1, w2, b2, compute_dtype=compute_dtype)
    return fully_connected_net_packed(x, packed, **kw)


if __name__ == "__main__":
    # Small shapes consistent with the module's forward:
    # input_size=256, HIDDEN_UNITS=128, num_classes=10.
    INPUT_SIZE, HIDDEN, NUM_CLASSES = 256, 128, 10

    key = jax.random.PRNGKey(0)
    kx, kw1, kb1, kw2, kb2, kx2 = jax.random.split(key, 6)

    # Deterministic init mimicking nn.Linear's uniform(-1/sqrt(fan_in), ...).
    lim1 = 1.0 / (INPUT_SIZE ** 0.5)
    lim2 = 1.0 / (HIDDEN ** 0.5)
    w1 = jax.random.uniform(kw1, (INPUT_SIZE, HIDDEN), jnp.float32, -lim1, lim1)
    b1 = jax.random.uniform(kb1, (HIDDEN,), jnp.float32, -lim1, lim1)
    w2 = jax.random.uniform(kw2, (HIDDEN, NUM_CLASSES), jnp.float32, -lim2, lim2)
    b2 = jax.random.uniform(kb2, (NUM_CLASSES,), jnp.float32, -lim2, lim2)

    def ref_fn(xv):
        return jnp.maximum(xv @ w1 + b1, 0.0) @ w2 + b2

    # One-time parameter packing (outside the hot path).
    packed_bf16 = prepack_params(w1, b1, w2, b2)                      # default bf16 MXU
    packed_f32 = prepack_params(w1, b1, w2, b2, compute_dtype=jnp.float32)

    # ---- Small batch (single grid step), bf16 MXU inputs (default path) ----
    B = 8
    x = jax.random.normal(kx, (B, INPUT_SIZE), dtype=jnp.float32)
    out_bf16 = fully_connected_net_packed(x, packed_bf16)
    jax.block_until_ready(out_bf16)
    assert out_bf16.shape == (B, NUM_CLASSES)
    assert jnp.allclose(out_bf16, ref_fn(x), atol=5e-2, rtol=5e-2)

    # ---- Same inputs, f32 MXU path: tight tolerance ----
    out_f32 = fully_connected_net_packed(x, packed_f32)
    jax.block_until_ready(out_f32)
    assert out_f32.shape == (B, NUM_CLASSES)
    assert jnp.allclose(out_f32, ref_fn(x), atol=1e-4, rtol=1e-4)

    # ---- Larger, non-tile-multiple batch: multi-step grid + ragged last tile ----
    B2 = 1037
    x2 = jax.random.normal(kx2, (B2, INPUT_SIZE), dtype=jnp.float32)
    out2 = fully_connected_net_packed(x2, packed_bf16)
    jax.block_until_ready(out2)
    assert out2.shape == (B2, NUM_CLASSES)
    assert jnp.allclose(out2, ref_fn(x2), atol=5e-2, rtol=5e-2)

    print("KERNEL_OK")
</pallas_src>

<mosaic_0001>
module attributes {stable_mosaic.version = 11 : i64} {
  func.func @_mlp_kernel(%arg0: i32, %arg1: memref<8x256xf32, #tpu.memory_space<vmem>>, %arg2: memref<256x128xbf16, #tpu.memory_space<vmem>>, %arg3: memref<1x128xf32, #tpu.memory_space<vmem>>, %arg4: memref<128x128xbf16, #tpu.memory_space<vmem>>, %arg5: memref<1x128xf32, #tpu.memory_space<vmem>>, %arg6: memref<8x128xf32, #tpu.memory_space<vmem>>) attributes {dimension_semantics = [#tpu.dimension_semantics<parallel>], iteration_bounds = array<i64: 1>, scalar_prefetch = 0 : i64, scratch_operands = 0 : i64, tpu.core_type = #tpu.core_type<tc>, window_params = [{transform_indices = @transform_0, window_bounds = array<i64: 8, 256>}, {pipeline_mode = #tpu.pipeline_mode<synchronous>, transform_indices = @transform_1, window_bounds = array<i64: 256, 128>}, {pipeline_mode = #tpu.pipeline_mode<synchronous>, transform_indices = @transform_2, window_bounds = array<i64: 1, 128>}, {pipeline_mode = #tpu.pipeline_mode<synchronous>, transform_indices = @transform_3, window_bounds = array<i64: 128, 128>}, {pipeline_mode = #tpu.pipeline_mode<synchronous>, transform_indices = @transform_4, window_bounds = array<i64: 1, 128>}, {transform_indices = @transform_5, window_bounds = array<i64: 8, 128>}]} {
    %c0 = arith.constant 0 : index
    %c0_0 = arith.constant 0 : index
    %0 = vector.load %arg1[%c0, %c0_0] : memref<8x256xf32, #tpu.memory_space<vmem>>, vector<8x256xf32>
    %1 = arith.truncf %0 : vector<8x256xf32> to vector<8x256xbf16>
    %c0_1 = arith.constant 0 : index
    %c0_2 = arith.constant 0 : index
    %2 = vector.load %arg2[%c0_1, %c0_2] : memref<256x128xbf16, #tpu.memory_space<vmem>>, vector<256x128xbf16>
    %cst = arith.constant dense<0.000000e+00> : vector<8x128xf32>
    %3 = tpu.matmul %1, %2, %cst {dimension_numbers = #tpu.dot_dimension_numbers<[1], [0], [0], [1], [0, 0, 1, 1], [], []>} : vector<8x256xbf16>, vector<256x128xbf16>, vector<8x128xf32> -> vector<8x128xf32>
    %c0_3 = arith.constant 0 : index
    %c0_4 = arith.constant 0 : index
    %4 = vector.load %arg3[%c0_3, %c0_4] : memref<1x128xf32, #tpu.memory_space<vmem>>, vector<1x128xf32>
    %5 = vector.broadcast %4 : vector<1x128xf32> to vector<8x128xf32>
    %6 = arith.addf %3, %5 : vector<8x128xf32>
    %cst_5 = arith.constant 0.000000e+00 : f32
    %7 = vector.broadcast %cst_5 : f32 to vector<8x128xf32>
    %8 = arith.maximumf %6, %7 : vector<8x128xf32>
    %9 = arith.truncf %8 : vector<8x128xf32> to vector<8x128xbf16>
    %c0_6 = arith.constant 0 : index
    %c0_7 = arith.constant 0 : index
    %10 = vector.load %arg4[%c0_6, %c0_7] : memref<128x128xbf16, #tpu.memory_space<vmem>>, vector<128x128xbf16>
    %cst_8 = arith.constant dense<0.000000e+00> : vector<8x128xf32>
    %11 = tpu.matmul %9, %10, %cst_8 {dimension_numbers = #tpu.dot_dimension_numbers<[1], [0], [0], [1], [0, 0, 1, 1], [], []>} : vector<8x128xbf16>, vector<128x128xbf16>, vector<8x128xf32> -> vector<8x128xf32>
    %c0_9 = arith.constant 0 : index
    %c0_10 = arith.constant 0 : index
    %12 = vector.load %arg5[%c0_9, %c0_10] : memref<1x128xf32, #tpu.memory_space<vmem>>, vector<1x128xf32>
    %13 = vector.broadcast %12 : vector<1x128xf32> to vector<8x128xf32>
    %14 = arith.addf %11, %13 : vector<8x128xf32>
    %c0_11 = arith.constant 0 : index
    %c0_12 = arith.constant 0 : index
    %15 = vector.load %arg6[%c0_11, %c0_12] : memref<8x128xf32, #tpu.memory_space<vmem>>, vector<8x128xf32>
    tpu.vector_store %arg6[%c0_11, %c0_12], %14 {strides = array<i32>} : memref<8x128xf32, #tpu.memory_space<vmem>>, vector<8x128xf32>,
    return
  }
  func.func @transform_0(%arg0: i32) -> (i32, i32) {
    %c0_i32 = arith.constant 0 : i32
    %c0_i32_0 = arith.constant 0 : i32
    return %arg0, %c0_i32 : i32, i32
  }
  func.func @transform_1(%arg0: i32) -> (i32, i32) {
    %c0_i32 = arith.constant 0 : i32
    %c0_i32_0 = arith.constant 0 : i32
    %c0_i32_1 = arith.constant 0 : i32
    return %c0_i32, %c0_i32_0 : i32, i32
  }
  func.func @transform_2(%arg0: i32) -> (i32, i32) {
    %c0_i32 = arith.constant 0 : i32
    %c0_i32_0 = arith.constant 0 : i32
    %c0_i32_1 = arith.constant 0 : i32
    return %c0_i32, %c0_i32_0 : i32, i32
  }
  func.func @transform_3(%arg0: i32) -> (i32, i32) {
    %c0_i32 = arith.constant 0 : i32
    %c0_i32_0 = arith.constant 0 : i32
    %c0_i32_1 = arith.constant 0 : i32
    return %c0_i32, %c0_i32_0 : i32, i32
  }
  func.func @transform_4(%arg0: i32) -> (i32, i32) {
    %c0_i32 = arith.constant 0 : i32
    %c0_i32_0 = arith.constant 0 : i32
    %c0_i32_1 = arith.constant 0 : i32
    return %c0_i32, %c0_i32_0 : i32, i32
  }
  func.func @transform_5(%arg0: i32) -> (i32, i32) {
    %c0_i32 = arith.constant 0 : i32
    %c0_i32_0 = arith.constant 0 : i32
    return %arg0, %c0_i32 : i32, i32
  }
}

</mosaic_0001>

<llo_original>
// kernel: tpu_custom_call.1
$region0: #{tpu_custom_call.1}
  #allocation0 [shape = 'u32[]', space=smem, size = 0x4, offset = 0x4, fixed_abs, tag = 'smem constant byte address 0x4 - core index']
  #allocation1 [shape = 'u32[144,128]{1,0:T(1,128)}', space=vmem, size = 0x12000, scoped, tag = 'internal scratch']
  %s0 = inlined_call_operand.hbm [shape: f32[8,256], index: 0, kind: input, shape index: {}]
  %s1 = inlined_call_operand.hbm [shape: bf16[256,128], index: 1, kind: input, shape index: {}]
  %s2 = inlined_call_operand.vmem [shape: f32[1,128], index: 2, kind: input, shape index: {}]
  %s3 = inlined_call_operand.hbm [shape: bf16[128,128], index: 3, kind: input, shape index: {}]
  %s4 = inlined_call_operand.vmem [shape: f32[1,128], index: 4, kind: input, shape index: {}]
  %s5 = inlined_call_operand.hbm [shape: f32[8,128], index: 5, kind: output, shape index: {}]
  %s6 = sld [smem:[#allocation0]]
  $region42: #{tpu_custom_call.1} parent=0
    _
  %s8 = ssub.s32 1, %s6
  %s9 = scalar_select 0, %s8, %s6
  $region1: #{tpu_custom_call.1} parent=0
    #allocation2 [shape = 'u8[8192]{0}', space=vmem, size = 0x2000, scoped, tag = 'input window, operand 0, single buffered']
    #allocation3 [shape = 's32[1]{0}', space=sflag, size = 0x4, scoped, tag = 'scoped memory for tpu_custom_call.1']
    #allocation4 [shape = 's32[1]{0}', space=sflag, size = 0x4, scoped, tag = 'scoped memory for tpu_custom_call.1']
    #allocation5 [shape = 'u8[65536]{0}', space=vmem, size = 0x10000, scoped, tag = 'input window, operand 1, single buffered']
    #allocation6 [shape = 's32[1]{0}', space=sflag, size = 0x4, scoped, tag = 'scoped memory for tpu_custom_call.1']
    #allocation7 [shape = 'u8[32768]{0}', space=vmem, size = 0x8000, scoped, tag = 'input window, operand 3, single buffered']
    #allocation8 [shape = 'u8[4096]{0}', space=vmem, size = 0x1000, scoped, tag = 'output window, operand 0, single buffered']
    %10 = vsyncpa [#allocation3], 0
    %11 = vsyncpa [#allocation6], 0
    %12 = vsyncpa [#allocation4], 0
    // Predicated region
    $region2: #{tpu_custom_call.1} parent=1 // pred_check
      _
    $region3: #{tpu_custom_call.1} parent=1 // pred_check_branch
      %14 = sbr.rel (0) target = $region5
    $region4: #{tpu_custom_call.1} parent=1 // pred_region
      %s16 = ssub.s32 256, 256
      %17 = vsyncadd [#allocation3], %s16
      %s19 = sshll.u32 [#allocation2], 4
      %s20 = int_to_ptr.vmem [resolvable:$true] %s19
      %22 = dma.hbm_to_vmem [thread:$0]  %s0, 256, %s20, [#allocation3]
    $region5: #{tpu_custom_call.1} parent=1 // pred_fallthru
      _
    // Predicated region
    $region6: #{tpu_custom_call.1} parent=1 // pred_check
      _
    $region7: #{tpu_custom_call.1} parent=1 // pred_check_branch
      %24 = sbr.rel (0) target = $region9
    $region8: #{tpu_custom_call.1} parent=1 // pred_region
      %s26 = ssub.s32 2048, 2048
      %27 = vsyncadd [#allocation6], %s26
      %s28 = sshll.u32 [#allocation5], 4
      %s29 = int_to_ptr.vmem [resolvable:$true] %s28
      %34 = dma.hbm_to_vmem [thread:$0]  %s1, 2048, %s29, [#allocation6], 64, 64, 4
    $region9: #{tpu_custom_call.1} parent=1 // pred_fallthru
      _
    // Predicated region
    $region10: #{tpu_custom_call.1} parent=1 // pred_check
      _
    $region11: #{tpu_custom_call.1} parent=1 // pred_check_branch
      %36 = sbr.rel (0) target = $region13
    $region12: #{tpu_custom_call.1} parent=1 // pred_region
      _
    $region13: #{tpu_custom_call.1} parent=1 // pred_fallthru
      _
    // Predicated region
    $region14: #{tpu_custom_call.1} parent=1 // pred_check
      _
    $region15: #{tpu_custom_call.1} parent=1 // pred_check_branch
      %38 = sbr.rel (0) target = $region17
    $region16: #{tpu_custom_call.1} parent=1 // pred_region
      %s40 = ssub.s32 1024, 1024
      %41 = vsyncadd [#allocation6], %s40
      %s42 = sshll.u32 [#allocation7], 4
      %s43 = int_to_ptr.vmem [resolvable:$true] %s42
      %48 = dma.hbm_to_vmem [thread:$0]  %s3, 1024, %s43, [#allocation6], 64, 64, 4
    $region17: #{tpu_custom_call.1} parent=1 // pred_fallthru
      _
    // Predicated region
    $region18: #{tpu_custom_call.1} parent=1 // pred_check
      _
    $region19: #{tpu_custom_call.1} parent=1 // pred_check_branch
      %50 = sbr.rel (0) target = $region21
    $region20: #{tpu_custom_call.1} parent=1 // pred_region
      _
    $region21: #{tpu_custom_call.1} parent=1 // pred_fallthru
      _
    // Predicated region
    $region22: #{tpu_custom_call.1} parent=1 // pred_check
      _
    $region23: #{tpu_custom_call.1} parent=1 // pred_check_branch
      %52 = sbr.rel (0) target = $region25
    $region24: #{tpu_custom_call.1} parent=1 // pred_region
      %53 = dma.done [#allocation3], 256
    $region25: #{tpu_custom_call.1} parent=1 // pred_fallthru
      _
    // Predicated region
    $region26: #{tpu_custom_call.1} parent=1 // pred_check
      _
    $region27: #{tpu_custom_call.1} parent=1 // pred_check_branch
      %55 = sbr.rel (0) target = $region29
    $region28: #{tpu_custom_call.1} parent=1 // pred_region
      %56 = dma.done [#allocation6], 2048
    $region29: #{tpu_custom_call.1} parent=1 // pred_fallthru
      _
    // Predicated region
    $region30: #{tpu_custom_call.1} parent=1 // pred_check
      _
    $region31: #{tpu_custom_call.1} parent=1 // pred_check_branch
      %58 = sbr.rel (0) target = $region33
    $region32: #{tpu_custom_call.1} parent=1 // pred_region
      %59 = dma.done [#allocation6], 1024
    $region33: #{tpu_custom_call.1} parent=1 // pred_fallthru
      _
    %v61 = vld [vmem:[#allocation2] sm:$0xff]
    %v62 = vld [vmem:[#allocation2 + $0x8] sm:$0xff]
    %v63 = vpack.c.bf16 %v61, %v61
    %v64 = vpack.c.bf16 %v62, %v62
    %v65 = vld [vmem:[#allocation5] sm:$0xf]
    %v66 = vld [vmem:[#allocation5 + $0x4] sm:$0xf]
    %v67 = vld [vmem:[#allocation5 + $0x8] sm:$0xf]
    %v68 = vld [vmem:[#allocation5 + $0xc] sm:$0xf]
    %v69 = vld [vmem:[#allocation5 + $0x10] sm:$0xf]
    %v70 = vld [vmem:[#allocation5 + $0x14] sm:$0xf]
    %v71 = vld [vmem:[#allocation5 + $0x18] sm:$0xf]
    %v72 = vld [vmem:[#allocation5 + $0x1c] sm:$0xf]
    %v73 = vld [vmem:[#allocation5 + $0x20] sm:$0xf]
    %v74 = vld [vmem:[#allocation5 + $0x24] sm:$0xf]
    %v75 = vld [vmem:[#allocation5 + $0x28] sm:$0xf]
    %v76 = vld [vmem:[#allocation5 + $0x2c] sm:$0xf]
    %v77 = vld [vmem:[#allocation5 + $0x30] sm:$0xf]
    %v78 = vld [vmem:[#allocation5 + $0x34] sm:$0xf]
    %v79 = vld [vmem:[#allocation5 + $0x38] sm:$0xf]
    %v80 = vld [vmem:[#allocation5 + $0x3c] sm:$0xf]
    %v81 = vld [vmem:[#allocation5 + $0x40] sm:$0xf]
    %v82 = vld [vmem:[#allocation5 + $0x44] sm:$0xf]
    %v83 = vld [vmem:[#allocation5 + $0x48] sm:$0xf]
    %v84 = vld [vmem:[#allocation5 + $0x4c] sm:$0xf]
    %v85 = vld [vmem:[#allocation5 + $0x50] sm:$0xf]
    %v86 = vld [vmem:[#allocation5 + $0x54] sm:$0xf]
    %v87 = vld [vmem:[#allocation5 + $0x58] sm:$0xf]
    %v88 = vld [vmem:[#allocation5 + $0x5c] sm:$0xf]
    %v89 = vld [vmem:[#allocation5 + $0x60] sm:$0xf]
    %v90 = vld [vmem:[#allocation5 + $0x64] sm:$0xf]
    %v91 = vld [vmem:[#allocation5 + $0x68] sm:$0xf]
    %v92 = vld [vmem:[#allocation5 + $0x6c] sm:$0xf]
    %v93 = vld [vmem:[#allocation5 + $0x70] sm:$0xf]
    %v94 = vld [vmem:[#allocation5 + $0x74] sm:$0xf]
    %v95 = vld [vmem:[#allocation5 + $0x78] sm:$0xf]
    %v96 = vld [vmem:[#allocation5 + $0x7c] sm:$0xf]
    %v97 = vld [vmem:[%s2] sm:$0x1]
    %v99 = vlaneseq
    %v100 = vshrl.u32 %v99, 7
    %v101 = vsub.s32 0, %v100
    %v102 = vrot.slane %v97, %v101
    %v136 = vunpack.c.l.b16 %v65
    %v137 = vunpack.c.l.b16 %v66
    %v138 = vunpack.c.l.b16 %v67
    %v139 = vunpack.c.l.b16 %v68
    %v140 = vunpack.c.l.b16 %v69
    %v141 = vunpack.c.l.b16 %v70
    %v142 = vunpack.c.l.b16 %v71
    %v143 = vunpack.c.l.b16 %v72
    %v144 = vunpack.c.l.b16 %v73
    %v145 = vunpack.c.l.b16 %v74
    %v146 = vunpack.c.l.b16 %v75
    %v147 = vunpack.c.l.b16 %v76
    %v148 = vunpack.c.l.b16 %v77
    %v149 = vunpack.c.l.b16 %v78
    %v150 = vunpack.c.l.b16 %v79
    %v151 = vunpack.c.l.b16 %v80
    %v152 = vunpack.c.l.b16 %v81
    %v153 = vunpack.c.l.b16 %v82
    %v154 = vunpack.c.l.b16 %v83
    %v155 = vunpack.c.l.b16 %v84
    %v156 = vunpack.c.l.b16 %v85
    %v157 = vunpack.c.l.b16 %v86
    %v158 = vunpack.c.l.b16 %v87
    %v159 = vunpack.c.l.b16 %v88
    %v160 = vunpack.c.l.b16 %v89
    %v161 = vunpack.c.l.b16 %v90
    %v162 = vunpack.c.l.b16 %v91
    %v163 = vunpack.c.l.b16 %v92
    %v164 = vunpack.c.l.b16 %v93
    %v165 = vunpack.c.l.b16 %v94
    %v166 = vunpack.c.l.b16 %v95
    %v167 = vunpack.c.l.b16 %v96
    %v168 = vpack.c.b16 %v137, %v136
    %v169 = vpack.c.b16 %v139, %v138
    %v170 = vpack.c.b16 %v141, %v140
    %v171 = vpack.c.b16 %v143, %v142
    %v172 = vpack.c.b16 %v145, %v144
    %v173 = vpack.c.b16 %v147, %v146
    %v174 = vpack.c.b16 %v149, %v148
    %v175 = vpack.c.b16 %v151, %v150
    %v176 = vpack.c.b16 %v153, %v152
    %v177 = vpack.c.b16 %v155, %v154
    %v178 = vpack.c.b16 %v157, %v156
    %v179 = vpack.c.b16 %v159, %v158
    %v180 = vpack.c.b16 %v161, %v160
    %v181 = vpack.c.b16 %v163, %v162
    %v182 = vpack.c.b16 %v165, %v164
    %v183 = vpack.c.b16 %v167, %v166
    %200 = vmatprep.subr.bf16.mxu0 0
    %201 = vmatpush1.bf16.msra.mxu0 %v168
    %202 = vmatprep.subr.bf16.mxu0 0
    %203 = vmatpush1.bf16.msra.mxu0 %v169
    %204 = vmatprep.subr.bf16.mxu0 0
    %205 = vmatpush1.bf16.msra.mxu0 %v170
    %206 = vmatprep.subr.bf16.mxu0 0
    %207 = vmatpush1.bf16.msra.mxu0 %v171
    %208 = vmatprep.subr.bf16.mxu0 0
    %209 = vmatpush1.bf16.msra.mxu0 %v172
    %210 = vmatprep.subr.bf16.mxu0 0
    %211 = vmatpush1.bf16.msra.mxu0 %v173
    %212 = vmatprep.subr.bf16.mxu0 0
    %213 = vmatpush1.bf16.msra.mxu0 %v174
    %214 = vmatprep.subr.bf16.mxu0 0
    %215 = vmatpush1.bf16.msra.mxu0 %v175
    %216 = vmatprep.subr.bf16.mxu0 0
    %217 = vmatpush1.bf16.msra.mxu0 %v176
    %218 = vmatprep.subr.bf16.mxu0 0
    %219 = vmatpush1.bf16.msra.mxu0 %v177
    %220 = vmatprep.subr.bf16.mxu0 0
    %221 = vmatpush1.bf16.msra.mxu0 %v178
    %222 = vmatprep.subr.bf16.mxu0 0
    %223 = vmatpush1.bf16.msra.mxu0 %v179
    %224 = vmatprep.subr.bf16.mxu0 0
    %225 = vmatpush1.bf16.msra.mxu0 %v180
    %226 = vmatprep.subr.bf16.mxu0 0
    %227 = vmatpush1.bf16.msra.mxu0 %v181
    %228 = vmatprep.subr.bf16.mxu0 0
    %229 = vmatpush1.bf16.msra.mxu0 %v182
    %230 = vmatprep.subr.bf16.mxu0 0
    %231 = vmatpush1.bf16.msra.mxu0 %v183
    %232 = vmatprep.mubr.bf16.mxu0 %v64
    %233 = vmatmul.mubr.bf16.gmra.mrb[0].mxu0 %v63
    %v234 = vpop.f32.mrb[0].mxu0
    %v235 = vadd.f32 %v102, %v234
    %v236 = vpop.f32.mrb[0].mxu0
    %v237 = vpop.f32.mrb[0].mxu0
    %v238 = vpop.f32.mrb[0].mxu0
    %239 = vdwg.mxu0
    %v240 = vmax.f32 %v235, 0.0
    %v241 = vpack.c.bf16 %v240, %v240
    %v242 = vld [vmem:[#allocation7] sm:$0xf]
    %v243 = vld [vmem:[#allocation7 + $0x4] sm:$0xf]
    %v244 = vld [vmem:[#allocation7 + $0x8] sm:$0xf]
    %v245 = vld [vmem:[#allocation7 + $0xc] sm:$0xf]
    %v246 = vld [vmem:[#allocation7 + $0x10] sm:$0xf]
    %v247 = vld [vmem:[#allocation7 + $0x14] sm:$0xf]
    %v248 = vld [vmem:[#allocation7 + $0x18] sm:$0xf]
    %v249 = vld [vmem:[#allocation7 + $0x1c] sm:$0xf]
    %v250 = vld [vmem:[#allocation7 + $0x20] sm:$0xf]
    %v251 = vld [vmem:[#allocation7 + $0x24] sm:$0xf]
    %v252 = vld [vmem:[#allocation7 + $0x28] sm:$0xf]
    %v253 = vld [vmem:[#allocation7 + $0x2c] sm:$0xf]
    %v254 = vld [vmem:[#allocation7 + $0x30] sm:$0xf]
    %v255 = vld [vmem:[#allocation7 + $0x34] sm:$0xf]
    %v256 = vld [vmem:[#allocation7 + $0x38] sm:$0xf]
    %v257 = vld [vmem:[#allocation7 + $0x3c] sm:$0xf]
    %v258 = vld [vmem:[%s4] sm:$0x1]
    %v260 = vlaneseq
    %v261 = vshrl.u32 %v260, 7
    %v262 = vsub.s32 0, %v261
    %v263 = vrot.slane %v258, %v262
    %v281 = vunpack.c.l.b16 %v242
    %v282 = vunpack.c.l.b16 %v243
    %v283 = vunpack.c.l.b16 %v244
    %v284 = vunpack.c.l.b16 %v245
    %v285 = vunpack.c.l.b16 %v246
    %v286 = vunpack.c.l.b16 %v247
    %v287 = vunpack.c.l.b16 %v248
    %v288 = vunpack.c.l.b16 %v249
    %v289 = vunpack.c.l.b16 %v250
    %v290 = vunpack.c.l.b16 %v251
    %v291 = vunpack.c.l.b16 %v252
    %v292 = vunpack.c.l.b16 %v253
    %v293 = vunpack.c.l.b16 %v254
    %v294 = vunpack.c.l.b16 %v255
    %v295 = vunpack.c.l.b16 %v256
    %v296 = vunpack.c.l.b16 %v257
    %v297 = vpack.c.b16 %v282, %v281
    %v298 = vpack.c.b16 %v284, %v283
    %v299 = vpack.c.b16 %v286, %v285
    %v300 = vpack.c.b16 %v288, %v287
    %v301 = vpack.c.b16 %v290, %v289
    %v302 = vpack.c.b16 %v292, %v291
    %v303 = vpack.c.b16 %v294, %v293
    %v304 = vpack.c.b16 %v296, %v295
    %313 = vmatprep.subr.bf16.mxu0 0
    %314 = vmatpush1.bf16.msra.mxu0 %v297
    %315 = vmatprep.subr.bf16.mxu0 0
    %316 = vmatpush1.bf16.msra.mxu0 %v298
    %317 = vmatprep.subr.bf16.mxu0 0
    %318 = vmatpush1.bf16.msra.mxu0 %v299
    %319 = vmatprep.subr.bf16.mxu0 0
    %320 = vmatpush1.bf16.msra.mxu0 %v300
    %321 = vmatprep.subr.bf16.mxu0 0
    %322 = vmatpush1.bf16.msra.mxu0 %v301
    %323 = vmatprep.subr.bf16.mxu0 0
    %324 = vmatpush1.bf16.msra.mxu0 %v302
    %325 = vmatprep.subr.bf16.mxu0 0
    %326 = vmatpush1.bf16.msra.mxu0 %v303
    %327 = vmatprep.subr.bf16.mxu0 0
    %328 = vmatpush1.bf16.msra.mxu0 %v304
    %329 = vmatprep.subr.bf16.mxu0 0
    %330 = vmatpush1.bf16.msra.mxu0 0
    %331 = vmatprep.subr.bf16.mxu0 0
    %332 = vmatpush1.bf16.msra.mxu0 0
    %333 = vmatprep.subr.bf16.mxu0 0
    %334 = vmatpush1.bf16.msra.mxu0 0
    %335 = vmatprep.subr.bf16.mxu0 0
    %336 = vmatpush1.bf16.msra.mxu0 0
    %337 = vmatprep.subr.bf16.mxu0 0
    %338 = vmatpush1.bf16.msra.mxu0 0
    %339 = vmatprep.subr.bf16.mxu0 0
    %340 = vmatpush1.bf16.msra.mxu0 0
    %341 = vmatprep.subr.bf16.mxu0 0
    %342 = vmatpush1.bf16.msra.mxu0 0
    %343 = vmatprep.subr.bf16.mxu0 0
    %344 = vmatpush1.bf16.msra.mxu0 0
    %345 = vmatprep.mubr.bf16.mxu0 0
    %346 = vmatmul.mubr.bf16.gmra.mrb[0].mxu0 %v241
    %v347 = vpop.f32.mrb[0].mxu0
    %v348 = vadd.f32 %v263, %v347
    %v349 = vpop.f32.mrb[0].mxu0
    %v350 = vpop.f32.mrb[0].mxu0
    %v351 = vpop.f32.mrb[0].mxu0
    %352 = vdwg.mxu0
    %353 = vst [vmem:[#allocation8] sm:$0xff] %v348
    // Predicated region
    $region34: #{tpu_custom_call.1} parent=1 // pred_check
      _
    $region35: #{tpu_custom_call.1} parent=1 // pred_check_branch
      %355 = sbr.rel (0) target = $region37
    $region36: #{tpu_custom_call.1} parent=1 // pred_region
      %s357 = ssub.s32 128, 128
      %358 = vsyncadd [#allocation4], %s357
      %s360 = sshll.u32 [#allocation8], 4
      %s361 = int_to_ptr.vmem [resolvable:$true] %s360
      %363 = dma.vmem_to_hbm [thread:$0]  %s361, 128, %s5, [#allocation4]
    $region37: #{tpu_custom_call.1} parent=1 // pred_fallthru
      _
    // Predicated region
    $region38: #{tpu_custom_call.1} parent=1 // pred_check
      _
    $region39: #{tpu_custom_call.1} parent=1 // pred_check_branch
      %365 = sbr.rel (0) target = $region41
    $region40: #{tpu_custom_call.1} parent=1 // pred_region
      %366 = dma.done [#allocation4], 128
    $region41: #{tpu_custom_call.1} parent=1 // pred_fallthru
      _
    %367 = vsyncpa [#allocation3], 1
    %368 = vsyncpa [#allocation6], 1
    %369 = vsyncpa [#allocation4], 1

</llo_original>
